<compile_context>
chip_gen: v6e
topology: v6e:2x2x1
jax: 0.10.0
libtpu: 0.0.40
codegen_flags: <defaults>
</compile_context>

<pallas_src>
import functools

import jax
import jax.numpy as jnp
from jax.experimental import pallas as pl
from jax.experimental.pallas import tpu as pltpu

_MIB = 1024 * 1024


# --------------------------------------------------------------------------
# Device / budget helpers
# --------------------------------------------------------------------------
def _vmem_capacity_bytes():
    """Physical VMEM per TensorCore; conservative 64 MiB fallback (v7x)."""
    try:
        info = pltpu.get_tpu_info()
        cap = getattr(info, "vmem_capacity_bytes", None)
        if cap:
            return int(cap)
    except Exception:
        pass
    return 64 * _MIB


def _vmem_limit(working_set_bytes, cap_bytes):
    """Scoped VMEM limit: what the kernel needs + margin, capped below physical."""
    return int(min(0.9 * cap_bytes, max(32 * _MIB, working_set_bytes + 8 * _MIB)))


def _choose_spatial_tile(hw_pad, c, itemsize, budget_bytes):
    """Largest lane-dense (128-multiple) divisor of hw_pad whose pass-2 working
    set (~4 * C * T * itemsize: x + out, each double-buffered) fits the budget."""
    ngroups = hw_pad // 128
    cap_groups = max(1, budget_bytes // (4 * c * itemsize * 128))
    best = 1
    for d in range(1, ngroups + 1):
        if ngroups % d == 0 and d <= cap_groups:
            best = d
    return best * 128


# --------------------------------------------------------------------------
# Shared in-kernel fc helper (tiny: (C_r,C)@(C,2), ReLU, (C,C_r)@(C_r,2), sigmoid)
# --------------------------------------------------------------------------
def _fc_sigmoid(mean, mx, w1, w2):
    # Stack [mean | max] into (C, 2) so one matmul per fc layer serves both
    # branches; built with a select so no in-kernel concatenate is needed.
    col = jax.lax.broadcasted_iota(jnp.int32, (mean.shape[0], 2), 1)
    pooled = jnp.where(col == 0, mean, mx)                              # (C, 2) f32
    w1f = w1.astype(jnp.float32)
    w2f = w2.astype(jnp.float32)
    h = jnp.maximum(jnp.dot(w1f, pooled, preferred_element_type=jnp.float32), 0.0)
    o = jnp.dot(w2f, h, preferred_element_type=jnp.float32)            # (C, 2)
    return jax.nn.sigmoid(o[:, 0:1] + o[:, 1:2])                        # (C, 1)


# --------------------------------------------------------------------------
# Fused single-pass kernel: grid=(N,), whole (C, HW) slab per step
# --------------------------------------------------------------------------
def _cam_fused_kernel(x_ref, w1_ref, w2_ref, o_ref, *, hw):
    x = x_ref[...]                                                       # (C, HW)
    mean = jnp.sum(x, axis=-1, keepdims=True, dtype=jnp.float32) * (1.0 / hw)
    mx = jnp.max(x, axis=-1, keepdims=True).astype(jnp.float32)          # (C, 1)
    scale = _fc_sigmoid(mean, mx, w1_ref[...], w2_ref[...])              # (C, 1) f32
    # Multiply in the input dtype (bf16-native on v6e/v7x; f32 cast is a no-op).
    o_ref[...] = x * scale.astype(o_ref.dtype)


def _cam_fused(x_flat, w1, w2, cap_bytes, ws_bytes):
    N, C, HW = x_flat.shape
    return pl.pallas_call(
        functools.partial(_cam_fused_kernel, hw=float(HW)),
        out_shape=jax.ShapeDtypeStruct((N, C, HW), x_flat.dtype),
        grid_spec=pltpu.PrefetchScalarGridSpec(
            num_scalar_prefetch=0,
            grid=(N,),
            in_specs=[
                pl.BlockSpec((pl.Squeezed(), C, HW), lambda n: (n, 0, 0)),
                pl.BlockSpec(w1.shape, lambda n: (0, 0)),
                pl.BlockSpec(w2.shape, lambda n: (0, 0)),
            ],
            out_specs=pl.BlockSpec((pl.Squeezed(), C, HW), lambda n: (n, 0, 0)),
        ),
        compiler_params=pltpu.CompilerParams(
            dimension_semantics=("parallel",),
            vmem_limit_bytes=_vmem_limit(ws_bytes, cap_bytes)),
    )(x_flat, w1, w2)


# --------------------------------------------------------------------------
# Two-pass fallback (large slabs): pass 1 = reduce + fc, pass 2 = apply
# --------------------------------------------------------------------------
def _cam_reduce_fc_kernel(x_ref, w1_ref, w2_ref, scale_ref, sum_sc, max_sc, *,
                          hw_true, tile, needs_mask):
    # x_ref:     (C, T) spatial tile (batch dim squeezed), possibly zero-padded
    # scale_ref: (C, 1) f32 output, written only at the last spatial tile
    # sum_sc / max_sc: (C, 1) f32 VMEM accumulators
    t = pl.program_id(1)

    @pl.when(t == 0)
    def _():
        sum_sc[...] = jnp.zeros_like(sum_sc)
        max_sc[...] = jnp.full_like(max_sc, -jnp.inf)

    xf = x_ref[...].astype(jnp.float32)
    if needs_mask:
        col = t * tile + jax.lax.broadcasted_iota(jnp.int32, xf.shape, 1)
        valid = col < hw_true
        x_s = jnp.where(valid, xf, 0.0)
        x_m = jnp.where(valid, xf, -jnp.inf)
    else:
        x_s = xf
        x_m = xf

    sum_sc[...] = sum_sc[...] + jnp.sum(x_s, axis=-1, keepdims=True)
    max_sc[...] = jnp.maximum(max_sc[...], jnp.max(x_m, axis=-1, keepdims=True))

    @pl.when(t == pl.num_programs(1) - 1)
    def _():
        mean = sum_sc[...] * (1.0 / hw_true)
        scale_ref[...] = _fc_sigmoid(mean, max_sc[...], w1_ref[...], w2_ref[...])


def _cam_apply_kernel(scale_ref, x_ref, o_ref):
    # Pure streamed VPU multiply; no weights / matmuls in the hot loop.
    o_ref[...] = x_ref[...] * scale_ref[...].astype(o_ref.dtype)


def _cam_two_pass(x_flat, w1, w2, budget_bytes, cap_bytes, tile_override):
    N, C, HW = x_flat.shape
    itemsize = jnp.dtype(x_flat.dtype).itemsize

    if tile_override is not None:
        assert tile_override % 128 == 0, "tile_override must be a multiple of 128"
        T = tile_override
        hw_pad = ((HW + T - 1) // T) * T
    else:
        hw_pad = ((HW + 127) // 128) * 128
        T = _choose_spatial_tile(hw_pad, C, itemsize, budget_bytes)

    if hw_pad != HW:
        # Zero pad: exact for the mean (divides by true HW); max is masked in-kernel.
        x_flat = jnp.pad(x_flat, ((0, 0), (0, 0), (0, hw_pad - HW)))
    needs_mask = hw_pad != HW
    num_tiles = hw_pad // T

    w_bytes = 2 * (w1.size * jnp.dtype(w1.dtype).itemsize +
                   w2.size * jnp.dtype(w2.dtype).itemsize)
    ws1 = 2 * C * T * itemsize + C * T * 4 + w_bytes + 4 * C * 4
    ws2 = 4 * C * T * itemsize + 4 * C * 4

    # ---- Pass 1: tiled reduce + fused fc/sigmoid in the finalize ------------
    # TODO(synk): on v7x with N < 2, split the spatial axis into two "parallel"
    # groups with partial (C,1) accumulators so both TensorCores stay busy.
    scale = pl.pallas_call(
        functools.partial(_cam_reduce_fc_kernel, hw_true=HW, tile=T,
                          needs_mask=needs_mask),
        out_shape=jax.ShapeDtypeStruct((N, C, 1), jnp.float32),
        grid_spec=pltpu.PrefetchScalarGridSpec(
            num_scalar_prefetch=0,
            grid=(N, num_tiles),
            in_specs=[
                pl.BlockSpec((pl.Squeezed(), C, T), lambda n, t: (n, 0, t)),
                pl.BlockSpec(w1.shape, lambda n, t: (0, 0)),
                pl.BlockSpec(w2.shape, lambda n, t: (0, 0)),
            ],
            out_specs=pl.BlockSpec((pl.Squeezed(), C, 1), lambda n, t: (n, 0, 0)),
            scratch_shapes=[pltpu.VMEM((C, 1), jnp.float32),
                            pltpu.VMEM((C, 1), jnp.float32)],
        ),
        compiler_params=pltpu.CompilerParams(
            dimension_semantics=("parallel", "arbitrary"),
            vmem_limit_bytes=_vmem_limit(ws1, cap_bytes)),
    )(x_flat, w1, w2)

    # ---- Pass 2: streamed broadcast multiply, lane-dense tiles --------------
    # TODO(synk): if profiling shows exposed DMA at small T, add
    # pipeline_mode=pl.Buffered(3) on the x/out BlockSpecs.
    out_pad = pl.pallas_call(
        _cam_apply_kernel,
        out_shape=jax.ShapeDtypeStruct((N, C, hw_pad), x_flat.dtype),
        grid_spec=pltpu.PrefetchScalarGridSpec(
            num_scalar_prefetch=0,
            grid=(N, num_tiles),
            in_specs=[
                pl.BlockSpec((pl.Squeezed(), C, 1), lambda n, t: (n, 0, 0)),
                pl.BlockSpec((pl.Squeezed(), C, T), lambda n, t: (n, 0, t)),
            ],
            out_specs=pl.BlockSpec((pl.Squeezed(), C, T), lambda n, t: (n, 0, t)),
        ),
        compiler_params=pltpu.CompilerParams(
            dimension_semantics=("parallel", "parallel"),
            vmem_limit_bytes=_vmem_limit(ws2, cap_bytes)),
    )(scale, x_flat)

    return out_pad[:, :, :HW] if hw_pad != HW else out_pad


# --------------------------------------------------------------------------
# Public wrapper
# --------------------------------------------------------------------------
def cam_forward(x_nchw, w1, w2, *, force_two_pass=False, tile_override=None,
                vmem_budget_bytes=None):
    """x_nchw: (N, C, H, W); w1: (C_r, C); w2: (C, C_r)."""
    N, C, H, W = x_nchw.shape
    HW = H * W
    x_flat = x_nchw.reshape(N, C, HW)
    itemsize = jnp.dtype(x_flat.dtype).itemsize

    cap = _vmem_capacity_bytes()
    budget = int(vmem_budget_bytes) if vmem_budget_bytes is not None else int(0.5 * cap)

    # Fused-path working set: x + out blocks double-buffered, plus weights and
    # (for sub-f32 inputs) one f32-sized temp for the in-kernel reduction.
    w_bytes = 2 * (w1.size * jnp.dtype(w1.dtype).itemsize +
                   w2.size * jnp.dtype(w2.dtype).itemsize)
    slab = C * HW * itemsize
    ws_fused = 4 * slab + w_bytes + (C * HW * 4 if itemsize != 4 else 0) + _MIB

    if (not force_two_pass) and ws_fused <= budget:
        out = _cam_fused(x_flat, w1, w2, cap, ws_fused)
    else:
        out = _cam_two_pass(x_flat, w1, w2, budget, cap, tile_override)
    return out.reshape(N, C, H, W)


# --------------------------------------------------------------------------
# Plain-JAX reference (mirrors the PyTorch semantics)
# --------------------------------------------------------------------------
def cam_reference(x, w1, w2):
    avg = jnp.mean(x, axis=(2, 3), keepdims=True)        # (N, C, 1, 1)
    mx = jnp.max(x, axis=(2, 3), keepdims=True)          # (N, C, 1, 1)

    def fc(v):                                            # (N, C, 1, 1)
        v = v[:, :, 0, 0]                                  # (N, C)
        h = jnp.maximum(v @ w1.T, 0.0)                     # (N, C_r)
        o = h @ w2.T                                       # (N, C)
        return o[:, :, None, None]

    out = fc(avg) + fc(mx)
    return x * jax.nn.sigmoid(out)


if __name__ == "__main__":
    key = jax.random.PRNGKey(0)
    k_x, k_w1, k_w2, k_x2 = jax.random.split(key, 4)

    N, C, ratio = 2, 4, 2
    C_r = C // ratio
    # Conv2d(C, C_r, 1, bias=False) weight (C_r, C, 1, 1) -> squeezed (C_r, C)
    w1 = 0.1 * jax.random.normal(k_w1, (C_r, C), dtype=jnp.float32)
    # Conv2d(C_r, C, 1, bias=False) weight (C, C_r, 1, 1) -> squeezed (C, C_r)
    w2 = 0.1 * jax.random.normal(k_w2, (C, C_r), dtype=jnp.float32)

    # --- Test 1: fused single-pass path (HW multiple of 128, fits VMEM) -----
    H = W = 16
    x = jax.random.normal(k_x, (N, C, H, W), dtype=jnp.float32)
    y = jax.block_until_ready(cam_forward(x, w1, w2))
    y_ref = cam_reference(x, w1, w2)
    assert y.shape == (N, C, H, W)
    assert jnp.allclose(y, y_ref, atol=1e-5, rtol=1e-5), "fused path mismatch"

    # --- Test 2: two-pass fallback, non-128-multiple HW (pad + mask path) ---
    H2 = W2 = 14   # HW=196 -> padded to 256, T=128 -> 2 spatial tiles
    x2 = jax.random.normal(k_x2, (N, C, H2, W2), dtype=jnp.float32)
    y2 = jax.block_until_ready(
        cam_forward(x2, w1, w2, force_two_pass=True, tile_override=128))
    y2_ref = cam_reference(x2, w1, w2)
    assert y2.shape == (N, C, H2, W2)
    assert jnp.allclose(y2, y2_ref, atol=1e-5, rtol=1e-5), "two-pass path mismatch"

    print("KERNEL_OK")
</pallas_src>

<mosaic_0001>
module attributes {stable_mosaic.version = 11 : i64} {
  func.func @_cam_fused_kernel(%arg0: i32, %arg1: memref<1x4x256xf32, #tpu.memory_space<vmem>>, %arg2: memref<2x4xf32, #tpu.memory_space<vmem>>, %arg3: memref<4x2xf32, #tpu.memory_space<vmem>>, %arg4: memref<1x4x256xf32, #tpu.memory_space<vmem>>) attributes {dimension_semantics = [#tpu.dimension_semantics<parallel>], iteration_bounds = array<i64: 2>, scalar_prefetch = 0 : i64, scratch_operands = 0 : i64, tpu.core_type = #tpu.core_type<tc>, window_params = [{transform_indices = @transform_0, window_bounds = array<i64: 1, 4, 256>}, {pipeline_mode = #tpu.pipeline_mode<synchronous>, transform_indices = @transform_1, window_bounds = array<i64: 2, 4>}, {pipeline_mode = #tpu.pipeline_mode<synchronous>, transform_indices = @transform_2, window_bounds = array<i64: 4, 2>}, {transform_indices = @transform_3, window_bounds = array<i64: 1, 4, 256>}]} {
    %c0 = arith.constant 0 : index
    %c0_0 = arith.constant 0 : index
    %c0_1 = arith.constant 0 : index
    %0 = vector.load %arg1[%c0, %c0_0, %c0_1] : memref<1x4x256xf32, #tpu.memory_space<vmem>>, vector<1x4x256xf32>
    %1 = vector.shape_cast %0 : vector<1x4x256xf32> to vector<4x256xf32>
    %cst = arith.constant dense<0.000000e+00> : vector<4xf32>
    %2 = vector.multi_reduction <add>, %1, %cst [1] : vector<4x256xf32> to vector<4xf32>
    %3 = vector.shape_cast %2 : vector<4xf32> to vector<4x1xf32>
    %cst_2 = arith.constant 3.906250e-03 : f32
    %4 = vector.broadcast %cst_2 : f32 to vector<4x1xf32>
    %5 = arith.mulf %3, %4 : vector<4x1xf32>
    %cst_3 = arith.constant dense<0xFF800000> : vector<4xf32>
    %6 = vector.multi_reduction <maximumf>, %1, %cst_3 [1] : vector<4x256xf32> to vector<4xf32>
    %7 = vector.shape_cast %6 : vector<4xf32> to vector<4x1xf32>
    %c0_4 = arith.constant 0 : index
    %c0_5 = arith.constant 0 : index
    %8 = vector.load %arg2[%c0_4, %c0_5] : memref<2x4xf32, #tpu.memory_space<vmem>>, vector<2x4xf32>
    %c0_6 = arith.constant 0 : index
    %c0_7 = arith.constant 0 : index
    %9 = vector.load %arg3[%c0_6, %c0_7] : memref<4x2xf32, #tpu.memory_space<vmem>>, vector<4x2xf32>
    %10 = tpu.iota {dimensions = array<i32: 1>} : vector<4x2xi32>
    %c0_i32 = arith.constant 0 : i32
    %11 = vector.broadcast %c0_i32 : i32 to vector<4x2xi32>
    %12 = arith.cmpi eq, %10, %11 : vector<4x2xi32>
    %13 = vector.shape_cast %5 : vector<4x1xf32> to vector<4x1xf32>
    %14 = vector.broadcast %13 : vector<4x1xf32> to vector<4x2xf32>
    %15 = vector.shape_cast %7 : vector<4x1xf32> to vector<4x1xf32>
    %16 = vector.broadcast %15 : vector<4x1xf32> to vector<4x2xf32>
    %17 = arith.select %12, %14, %16 : vector<4x2xi1>, vector<4x2xf32>
    %cst_8 = arith.constant dense<0.000000e+00> : vector<2x2xf32>
    %18 = tpu.matmul %8, %17, %cst_8 {dimension_numbers = #tpu.dot_dimension_numbers<[1], [0], [0], [1], [0, 0, 1, 1], [], []>} : vector<2x4xf32>, vector<4x2xf32>, vector<2x2xf32> -> vector<2x2xf32>
    %cst_9 = arith.constant 0.000000e+00 : f32
    %19 = vector.broadcast %cst_9 : f32 to vector<2x2xf32>
    %20 = arith.maximumf %18, %19 : vector<2x2xf32>
    %cst_10 = arith.constant dense<0.000000e+00> : vector<4x2xf32>
    %21 = tpu.matmul %9, %20, %cst_10 {dimension_numbers = #tpu.dot_dimension_numbers<[1], [0], [0], [1], [0, 0, 1, 1], [], []>} : vector<4x2xf32>, vector<2x2xf32>, vector<4x2xf32> -> vector<4x2xf32>
    %22 = vector.extract_strided_slice %21 {offsets = [0, 0], sizes = [4, 1], strides = [1, 1]} : vector<4x2xf32> to vector<4x1xf32>
    %23 = vector.extract_strided_slice %21 {offsets = [0, 1], sizes = [4, 1], strides = [1, 1]} : vector<4x2xf32> to vector<4x1xf32>
    %24 = arith.addf %22, %23 : vector<4x1xf32>
    %25 = arith.negf %24 : vector<4x1xf32>
    %26 = math.exp %25 : vector<4x1xf32>
    %cst_11 = arith.constant 1.000000e+00 : f32
    %27 = vector.broadcast %cst_11 : f32 to vector<4x1xf32>
    %28 = arith.addf %27, %26 : vector<4x1xf32>
    %29 = arith.divf %27, %28 : vector<4x1xf32>
    %30 = vector.broadcast %29 : vector<4x1xf32> to vector<4x256xf32>
    %31 = arith.mulf %1, %30 : vector<4x256xf32>
    %c0_12 = arith.constant 0 : index
    %c0_13 = arith.constant 0 : index
    %c0_14 = arith.constant 0 : index
    %32 = vector.load %arg4[%c0_12, %c0_13, %c0_14] : memref<1x4x256xf32, #tpu.memory_space<vmem>>, vector<1x4x256xf32>
    %33 = vector.shape_cast %32 : vector<1x4x256xf32> to vector<4x256xf32>
    %34 = vector.shape_cast %31 : vector<4x256xf32> to vector<1x4x256xf32>
    tpu.vector_store %arg4[%c0_12, %c0_13, %c0_14], %34 {strides = array<i32>} : memref<1x4x256xf32, #tpu.memory_space<vmem>>, vector<1x4x256xf32>,
    return
  }
  func.func @transform_0(%arg0: i32) -> (i32, i32, i32) {
    %c0_i32 = arith.constant 0 : i32
    %c0_i32_0 = arith.constant 0 : i32
    %c0_i32_1 = arith.constant 0 : i32
    return %arg0, %c0_i32, %c0_i32_0 : i32, i32, i32
  }
  func.func @transform_1(%arg0: i32) -> (i32, i32) {
    %c0_i32 = arith.constant 0 : i32
    %c0_i32_0 = arith.constant 0 : i32
    %c0_i32_1 = arith.constant 0 : i32
    return %c0_i32, %c0_i32_0 : i32, i32
  }
  func.func @transform_2(%arg0: i32) -> (i32, i32) {
    %c0_i32 = arith.constant 0 : i32
    %c0_i32_0 = arith.constant 0 : i32
    %c0_i32_1 = arith.constant 0 : i32
    return %c0_i32, %c0_i32_0 : i32, i32
  }
  func.func @transform_3(%arg0: i32) -> (i32, i32, i32) {
    %c0_i32 = arith.constant 0 : i32
    %c0_i32_0 = arith.constant 0 : i32
    %c0_i32_1 = arith.constant 0 : i32
    return %arg0, %c0_i32, %c0_i32_0 : i32, i32, i32
  }
}

</mosaic_0001>

<llo_original>
// kernel: tpu_custom_call.1
$region0: #{tpu_custom_call.1}
  #allocation0 [shape = 'u32[]', space=smem, size = 0x4, offset = 0x4, fixed_abs, tag = 'smem constant byte address 0x4 - core index']
  #allocation1 [shape = 'u32[144,128]{1,0:T(1,128)}', space=vmem, size = 0x12000, scoped, tag = 'internal scratch']
  %s0 = inlined_call_operand.hbm [shape: f32[2,4,256], index: 0, kind: input, shape index: {}]
  %s1 = inlined_call_operand.vmem [shape: f32[2,4], index: 1, kind: input, shape index: {}]
  %s2 = inlined_call_operand.vmem [shape: f32[4,2], index: 2, kind: input, shape index: {}]
  %s3 = inlined_call_operand.hbm [shape: f32[2,4,256], index: 3, kind: output, shape index: {}]
  %s4 = sld [smem:[#allocation0]]
  $region49: #{tpu_custom_call.1} parent=0
    _
  %s6 = ssub.s32 1, %s4
  %s7 = scalar_select 0, %s6, %s4
  $region1: #{tpu_custom_call.1} parent=0
    #allocation2 [shape = 'u8[8192]{0}', space=vmem, size = 0x2000, scoped, tag = 'input window, operand 0']
    #allocation3 [shape = 's32[2]{0}', space=sflag, size = 0x8, scoped, tag = 'scoped memory for tpu_custom_call.1']
    #allocation4 [shape = 's32[2]{0}', space=sflag, size = 0x8, scoped, tag = 'scoped memory for tpu_custom_call.1']
    #allocation5 [shape = 'u8[8192]{0}', space=vmem, size = 0x2000, scoped, tag = 'output window, operand 0']
    %8 = vsyncpa [#allocation3], 0
    %s9 = scalar_lea.sflag [#allocation3], 1
    %10 = vsyncpa %s9, 0
    %11 = vsyncpa [#allocation4], 0
    %s12 = scalar_lea.sflag [#allocation4], 1
    %13 = vsyncpa %s12, 0
    loop: start=0, step=1, limit=4
    $region2: #{tpu_custom_call.1} parent=1 // loop_pre_header
      _
    $region3: #{tpu_custom_call.1} parent=1 // loop_header
      %s15 = sphi 0, %s19
      %p16 = scmp.ge.s32.totalorder %s15, 4
      %s25 = sphi 0, %s27
      %s28 = sphi 0, %s25
      %s29 = sphi 0, %s28
      %s45 = sphi 0, %s29
      %s49 = sphi 0, %s49
      %s51 = sphi 0, %s49
      %s52 = sphi 0, %s51
      %s66 = sphi 0, %s52
      %s70 = sphi 0, %s70
      %s72 = sphi 0, %s70
      %s73 = sphi 0, %s72
      %s87 = sphi 0, %s73
      %s93 = sphi 0, %s95
      %s96 = sphi 0, %s93
      %s97 = sphi 0, %s96
      %s113 = sphi 0, %s97
    $region4: #{tpu_custom_call.1} parent=1 // loop_header_branch
      %18 = sbr.rel (%p16) target = $region8
    $region5: #{tpu_custom_call.1} parent=1 // loop_body
      %s20 = ssub.s32 %s15, 1
      %s21 = ssub.s32 %s15, 2
      %s22 = sadd.s32 %s15, 1
      %s23 = ssub.s32 %s15, %s22
      %p24 = scmp.eq.s32.totalorder %s23, 0
      %s26 = sadd.s32 %s25, 1
      %s27 = scalar_select %p24, %s25, %s26
      %p30 = pneg %p24
      %p31 = scmp.eq.s32.totalorder %s15, 1
      %p32 = por %p30, %p31
      %p33 = scmp.ne.s32.totalorder %s25, %s28
      %p34 = scmp.eq.s32.totalorder %s15, 0
      %p35 = por %p33, %p34
      %p36 = scmp.ne.s32.totalorder %s25, %s28
      %p37 = scmp.eq.s32.totalorder %s20, 1
      %p38 = por %p36, %p37
      %p39 = scmp.ne.s32.totalorder %s28, %s29
      %p40 = scmp.eq.s32.totalorder %s20, 0
      %p41 = por %p39, %p40
      %p42 = scmp.ne.s32.totalorder %s28, %s29
      %p43 = scmp.eq.s32.totalorder %s21, 1
      %p44 = por %p42, %p43
      %p46 = scmp.ne.s32.totalorder %s29, %s45
      %p47 = scmp.eq.s32.totalorder %s21, 0
      %p48 = por %p46, %p47
      %s50 = sadd.s32 %s49, 1
      %p53 = scmp.eq.s32.totalorder %s15, 1
      %p54 = scmp.ne.s32.totalorder %s49, %s51
      %p55 = scmp.eq.s32.totalorder %s15, 0
      %p56 = por %p54, %p55
      %p57 = scmp.ne.s32.totalorder %s49, %s51
      %p58 = scmp.eq.s32.totalorder %s20, 1
      %p59 = por %p57, %p58
      %p60 = scmp.ne.s32.totalorder %s51, %s52
      %p61 = scmp.eq.s32.totalorder %s20, 0
      %p62 = por %p60, %p61
      %p63 = scmp.ne.s32.totalorder %s51, %s52
      %p64 = scmp.eq.s32.totalorder %s21, 1
      %p65 = por %p63, %p64
      %p67 = scmp.ne.s32.totalorder %s52, %s66
      %p68 = scmp.eq.s32.totalorder %s21, 0
      %p69 = por %p67, %p68
      %s71 = sadd.s32 %s70, 1
      %p74 = scmp.eq.s32.totalorder %s15, 1
      %p75 = scmp.ne.s32.totalorder %s70, %s72
      %p76 = scmp.eq.s32.totalorder %s15, 0
      %p77 = por %p75, %p76
      %p78 = scmp.ne.s32.totalorder %s70, %s72
      %p79 = scmp.eq.s32.totalorder %s20, 1
      %p80 = por %p78, %p79
      %p81 = scmp.ne.s32.totalorder %s72, %s73
      %p82 = scmp.eq.s32.totalorder %s20, 0
      %p83 = por %p81, %p82
      %p84 = scmp.ne.s32.totalorder %s72, %s73
      %p85 = scmp.eq.s32.totalorder %s21, 1
      %p86 = por %p84, %p85
      %p88 = scmp.ne.s32.totalorder %s73, %s87
      %p89 = scmp.eq.s32.totalorder %s21, 0
      %p90 = por %p88, %p89
      %s91 = ssub.s32 %s15, %s22
      %p92 = scmp.eq.s32.totalorder %s91, 0
      %s94 = sadd.s32 %s93, 1
      %s95 = scalar_select %p92, %s93, %s94
      %p98 = pneg %p92
      %p99 = scmp.eq.s32.totalorder %s15, 1
      %p100 = por %p98, %p99
      %p101 = scmp.ne.s32.totalorder %s93, %s96
      %p102 = scmp.eq.s32.totalorder %s15, 0
      %p103 = por %p101, %p102
      %p104 = scmp.ne.s32.totalorder %s93, %s96
      %p105 = scmp.eq.s32.totalorder %s20, 1
      %p106 = por %p104, %p105
      %p107 = scmp.ne.s32.totalorder %s96, %s97
      %p108 = scmp.eq.s32.totalorder %s20, 0
      %p109 = por %p107, %p108
      %p110 = scmp.ne.s32.totalorder %s96, %s97
      %p111 = scmp.eq.s32.totalorder %s21, 1
      %p112 = por %p110, %p111
      %p114 = scmp.ne.s32.totalorder %s97, %s113
      %p115 = scmp.eq.s32.totalorder %s21, 0
      %p116 = por %p114, %p115
      %p117 = scmp.le.s32.totalorder 1, %s15
      %p118 = scmp.lt.s32.totalorder %s15, 3
      %p119 = pnand %p117, %p118
      %p120 = pneg %p119
      // Predicated region
      $region9: #{tpu_custom_call.1} parent=5 // pred_check
        _
      $region10: #{tpu_custom_call.1} parent=5 // pred_check_branch
        %122 = sbr.rel (%p119) target = $region12
      $region11: #{tpu_custom_call.1} parent=5 // pred_region
        %s123 = ssub.s32 %s15, 1
        // Predicated region
        $region13: #{tpu_custom_call.1} parent=11 // pred_check
          %p124 = pneg %p62
        $region14: #{tpu_custom_call.1} parent=11 // pred_check_branch
          %126 = sbr.rel (%p124) target = $region16
        $region15: #{tpu_custom_call.1} parent=11 // pred_region
          _
        $region16: #{tpu_custom_call.1} parent=11 // pred_fallthru
          _
        // Predicated region
        $region17: #{tpu_custom_call.1} parent=11 // pred_check
          %p127 = pneg %p83
        $region18: #{tpu_custom_call.1} parent=11 // pred_check_branch
          %129 = sbr.rel (%p127) target = $region20
        $region19: #{tpu_custom_call.1} parent=11 // pred_region
          _
        $region20: #{tpu_custom_call.1} parent=11 // pred_fallthru
          _
      $region12: #{tpu_custom_call.1} parent=5 // pred_fallthru
        _
      %p130 = scmp.lt.s32.totalorder %s15, 2
      // Predicated region
      $region21: #{tpu_custom_call.1} parent=5 // pred_check
        %p131 = pneg %p130
      $region22: #{tpu_custom_call.1} parent=5 // pred_check_branch
        %133 = sbr.rel (%p131) target = $region24
      $region23: #{tpu_custom_call.1} parent=5 // pred_region
        // Predicated region
        $region25: #{tpu_custom_call.1} parent=23 // pred_check
          %p134 = pneg %p35
        $region26: #{tpu_custom_call.1} parent=23 // pred_check_branch
          %136 = sbr.rel (%p134) target = $region28
        $region27: #{tpu_custom_call.1} parent=23 // pred_region
          %s137 = sand.u32 %s25, 1
          %s138 = scalar_lea.sflag [#allocation3], %s137
          %s139 = sand.u32 %s25, 1
          %s140 = smul.addr %s139, 8
          %s141 = scalar_lea.vmem [#allocation2], %s140
          %s143 = ssub.s32 128, 128
          %144 = vsyncadd %s138, %s143
          %s145 = smul.addr %s15, 2
          %s146 = smul.addr %s145, 64
          %s147 = scalar_lea.hbm %s0, %s146
          %s149 = sshll.u32 %s141, 4
          %s150 = int_to_ptr.vmem [resolvable:$true] %s149
          %152 = dma.hbm_to_vmem [thread:$0]  %s147, 128, %s150, %s138
        $region28: #{tpu_custom_call.1} parent=23 // pred_fallthru
          _
      $region24: #{tpu_custom_call.1} parent=5 // pred_fallthru
        _
      %p153 = scmp.le.s32.totalorder 1, %s15
      %p154 = scmp.lt.s32.totalorder %s15, 3
      %p155 = pnand %p153, %p154
      %p156 = pneg %p155
      // Predicated region
      $region29: #{tpu_custom_call.1} parent=5 // pred_check
        _
      $region30: #{tpu_custom_call.1} parent=5 // pred_check_branch
        %158 = sbr.rel (%p155) target = $region32
      $region31: #{tpu_custom_call.1} parent=5 // pred_region
        %s159 = ssub.s32 %s15, 1
        %s160 = sand.u32 %s28, 1
        %s161 = scalar_lea.sflag [#allocation3], %s160
        %s162 = sand.u32 %s28, 1
        %s163 = smul.addr %s162, 8
        %s164 = scalar_lea.vmem [#allocation2], %s163
        // Predicated region
        $region33: #{tpu_custom_call.1} parent=31 // pred_check
          %p165 = pneg %p41
        $region34: #{tpu_custom_call.1} parent=31 // pred_check_branch
          %167 = sbr.rel (%p165) target = $region36
        $region35: #{tpu_custom_call.1} parent=31 // pred_region
          %168 = dma.done %s161, 128
        $region36: #{tpu_custom_call.1} parent=31 // pred_fallthru
          _
        %s169 = sand.u32 %s28, 1
        %s170 = scalar_lea.sflag [#allocation3], %s169
        %s171 = sand.u32 %s28, 1
        %s172 = smul.addr %s171, 8
        %s173 = scalar_lea.vmem [#allocation2], %s172
        %p174 = pneg %p41
        %p175 = pneg %p38
        %p176 = pneg %p62
        %p177 = pneg %p59
        %p178 = pneg %p83
        %p179 = pneg %p80
        %p180 = pneg %p109
        %p181 = pneg %p106
        %s182 = sand.u32 %s96, 1
        %s183 = scalar_lea.sflag [#allocation4], %s182
        %s184 = sand.u32 %s96, 1
        %s185 = smul.addr %s184, 8
        %s186 = scalar_lea.vmem [#allocation5], %s185
        %v187 = vld [vmem:[%s164] sm:$0xff]
        %v189 = vcombine.high %v187, %v187
        %vm191 = vcmask 1043456
        %v192 = vsel %vm191, %v187, 0.0
        %v193 = vsel %vm191, %v189, 0.0
        %v194 = vadd.f32 %v192, %v193
        %195 = vadd.xlane.f32.xlu0 %v194
        %v196 = vpop.xlane.xlu0 %195
        %v197 = vmul.f32 %v196, 0.00390625
        %v198 = vsel %vm191, %v187, -inf
        %v199 = vsel %vm191, %v189, -inf
        %v200 = vmax.f32 %v198, %v199
        %201 = vmax.xlane.f32.xlu0 %v200
        %v202 = vpop.xlane.xlu0 %201
        %v203 = vld [vmem:[%s1] sm:$0x3]
        %v204 = vld [vmem:[%s2] sm:$0xf]
        %v205 = vlaneseq
        %v206 = vand.u32 %v205, 127
        %vm207 = vcmp.eq.s32.totalorder %v206, 0
        %v208 = vsel %vm207, %v197, %v202
        %vm209 = vcmask 31744
        %v211 = vsel %vm209, %v203, 0
        %v214 = vsel %vm191, %v208, 0
        %216 = vmatprep.subr.mxu0 0.0
        %217 = vmatpush1.msra.mxu0 0.0
        %218 = vmatprep.subr.mxu0 0.0
        %219 = vmatpush1.msra.mxu0 0.0
        %220 = vmatprep.subr.mxu0 0.0
        %221 = vmatpush1.msra.mxu0 0.0
        %222 = vmatprep.subr.mxu0 0.0
        %223 = vmatpush1.msra.mxu0 0.0
        %224 = vmatprep.subr.mxu0 0.0
        %225 = vmatpush1.msra.mxu0 0.0
        %226 = vmatprep.subr.mxu0 0.0
        %227 = vmatpush1.msra.mxu0 0.0
        %228 = vmatprep.subr.mxu0 0.0
        %229 = vmatpush1.msra.mxu0 0.0
        %230 = vmatprep.subr.mxu0 0.0
        %231 = vmatpush1.msra.mxu0 0.0
        %232 = vmatprep.subr.mxu0 0.0
        %233 = vmatpush1.msra.mxu0 0.0
        %234 = vmatprep.subr.mxu0 0.0
        %235 = vmatpush1.msra.mxu0 0.0
        %236 = vmatprep.subr.mxu0 0.0
        %237 = vmatpush1.msra.mxu0 0.0
        %238 = vmatprep.subr.mxu0 0.0
        %239 = vmatpush1.msra.mxu0 0.0
        %240 = vmatprep.subr.mxu0 0.0
        %241 = vmatpush1.msra.mxu0 0.0
        %242 = vmatprep.subr.mxu0 0.0
        %243 = vmatpush1.msra.mxu0 0.0
        %244 = vmatprep.subr.mxu0 0.0
        %245 = vmatpush1.msra.mxu0 0.0
        %246 = vmatprep.subr.mxu0 0.0
        %247 = vmatpush1.msra.mxu0 %v214
        %248 = vmatprep.subr.mxu0 0.0
        %249 = vmatpush2.msra.mxu0 0.0
        %250 = vmatprep.subr.mxu0 0.0
        %251 = vmatpush2.msra.mxu0 0.0
        %252 = vmatprep.subr.mxu0 0.0
        %253 = vmatpush2.msra.mxu0 0.0
        %254 = vmatprep.subr.mxu0 0.0
        %255 = vmatpush2.msra.mxu0 0.0
        %256 = vmatprep.subr.mxu0 0.0
        %257 = vmatpush2.msra.mxu0 0.0
        %258 = vmatprep.subr.mxu0 0.0
        %259 = vmatpush2.msra.mxu0 0.0
        %260 = vmatprep.subr.mxu0 0.0
        %261 = vmatpush2.msra.mxu0 0.0
        %262 = vmatprep.subr.mxu0 0.0
        %263 = vmatpush2.msra.mxu0 0.0
        %264 = vmatprep.subr.mxu0 0.0
        %265 = vmatpush2.msra.mxu0 0.0
        %266 = vmatprep.subr.mxu0 0.0
        %267 = vmatpush2.msra.mxu0 0.0
        %268 = vmatprep.subr.mxu0 0.0
        %269 = vmatpush2.msra.mxu0 0.0
        %270 = vmatprep.subr.mxu0 0.0
        %271 = vmatpush2.msra.mxu0 0.0
        %272 = vmatprep.subr.mxu0 0.0
        %273 = vmatpush2.msra.mxu0 0.0
        %274 = vmatprep.subr.mxu0 0.0
        %275 = vmatpush2.msra.mxu0 0.0
        %276 = vmatprep.subr.mxu0 0.0
        %277 = vmatpush2.msra.mxu0 0.0
        %278 = vmatprep.subr.mxu0 0.0
        %279 = vmatpush2.msra.mxu0 0.0
        %280 = vmatprep.mubr.f32.mxu0 0.0
        %281 = vmatmul.mubr.f32.gmra.mxu0 %v211
        %v282 = vpop.f32.mrf.mxu0
        %v283 = vadd.f32 0.0, %v282
        %v284 = vpop.f32.mrf.mxu0
        %285 = vdwg.mxu0
        %v286 = vmax.f32 %v283, 0.0
        %vm287 = vcmask 15360
        %v289 = vsel %vm287, %v204, 0
        %vm291 = vcmask 1041408
        %v293 = vsel %vm291, %v286, 0
        %295 = vmatprep.subr.mxu0 0.0
        %296 = vmatpush1.msra.mxu0 0.0
        %297 = vmatprep.subr.mxu0 0.0
        %298 = vmatpush1.msra.mxu0 0.0
        %299 = vmatprep.subr.mxu0 0.0
        %300 = vmatpush1.msra.mxu0 0.0
        %301 = vmatprep.subr.mxu0 0.0
        %302 = vmatpush1.msra.mxu0 0.0
        %303 = vmatprep.subr.mxu0 0.0
        %304 = vmatpush1.msra.mxu0 0.0
        %305 = vmatprep.subr.mxu0 0.0
        %306 = vmatpush1.msra.mxu0 0.0
        %307 = vmatprep.subr.mxu0 0.0
        %308 = vmatpush1.msra.mxu0 0.0
        %309 = vmatprep.subr.mxu0 0.0
        %310 = vmatpush1.msra.mxu0 0.0
        %311 = vmatprep.subr.mxu0 0.0
        %312 = vmatpush1.msra.mxu0 0.0
        %313 = vmatprep.subr.mxu0 0.0
        %314 = vmatpush1.msra.mxu0 0.0
        %315 = vmatprep.subr.mxu0 0.0
        %316 = vmatpush1.msra.mxu0 0.0
        %317 = vmatprep.subr.mxu0 0.0
        %318 = vmatpush1.msra.mxu0 0.0
        %319 = vmatprep.subr.mxu0 0.0
        %320 = vmatpush1.msra.mxu0 0.0
        %321 = vmatprep.subr.mxu0 0.0
        %322 = vmatpush1.msra.mxu0 0.0
        %323 = vmatprep.subr.mxu0 0.0
        %324 = vmatpush1.msra.mxu0 0.0
        %325 = vmatprep.subr.mxu0 0.0
        %326 = vmatpush1.msra.mxu0 %v293
        %327 = vmatprep.subr.mxu0 0.0
        %328 = vmatpush2.msra.mxu0 0.0
        %329 = vmatprep.subr.mxu0 0.0
        %330 = vmatpush2.msra.mxu0 0.0
        %331 = vmatprep.subr.mxu0 0.0
        %332 = vmatpush2.msra.mxu0 0.0
        %333 = vmatprep.subr.mxu0 0.0
        %334 = vmatpush2.msra.mxu0 0.0
        %335 = vmatprep.subr.mxu0 0.0
        %336 = vmatpush2.msra.mxu0 0.0
        %337 = vmatprep.subr.mxu0 0.0
        %338 = vmatpush2.msra.mxu0 0.0
        %339 = vmatprep.subr.mxu0 0.0
        %340 = vmatpush2.msra.mxu0 0.0
        %341 = vmatprep.subr.mxu0 0.0
        %342 = vmatpush2.msra.mxu0 0.0
        %343 = vmatprep.subr.mxu0 0.0
        %344 = vmatpush2.msra.mxu0 0.0
        %345 = vmatprep.subr.mxu0 0.0
        %346 = vmatpush2.msra.mxu0 0.0
        %347 = vmatprep.subr.mxu0 0.0
        %348 = vmatpush2.msra.mxu0 0.0
        %349 = vmatprep.subr.mxu0 0.0
        %350 = vmatpush2.msra.mxu0 0.0
        %351 = vmatprep.subr.mxu0 0.0
        %352 = vmatpush2.msra.mxu0 0.0
        %353 = vmatprep.subr.mxu0 0.0
        %354 = vmatpush2.msra.mxu0 0.0
        %355 = vmatprep.subr.mxu0 0.0
        %356 = vmatpush2.msra.mxu0 0.0
        %357 = vmatprep.subr.mxu0 0.0
        %358 = vmatpush2.msra.mxu0 0.0
        %359 = vmatprep.mubr.f32.mxu0 0.0
        %360 = vmatmul.mubr.f32.gmra.mxu0 %v289
        %v361 = vpop.f32.mrf.mxu0
        %v362 = vadd.f32 0.0, %v361
        %v363 = vpop.f32.mrf.mxu0
        %364 = vdwg.mxu0
        %366 = vrot.lane.b32.xlu0 %v362, 127
        %v367 = vpop.permute.xlu0 %366
        %v369 = vadd.f32 %v362, %v367
        %v370 = vxor.u32 %v369, 2147483648
        %v371 = vmul.f32 %v370, 1.442695
        %v372 = vpow.pop %v371
        %v373 = vadd.f32 %v372, 1.0
        %v374 = vrcp.pop %v373
        %v375 = vmul.f32 1.0, %v374
        %377 = vset.pattern.permute.xlu0 0
        %378 = vperm.xlu0 %377, %v375
        %v379 = vpop.permute.xlu0 %378
        %v381 = vunpack.c.l.s4 839922192
        %v382 = vunpack.c.0.s8 %v381
        %v383 = vlaneseq
        %v384 = vshrl.u32 %v383, 7
        %v385 = vsub.s32 %v382, %v384
        %v386 = vrot.slane %v379, %v385
        %v388 = vmul.f32 %v187, %v386
        %389 = vst [vmem:[%s186] sm:$0xff] %v388
        %s390 = sand.u32 %s96, 1
        %s391 = scalar_lea.sflag [#allocation4], %s390
        %s392 = sand.u32 %s96, 1
        %s393 = smul.addr %s392, 8
        %s394 = scalar_lea.vmem [#allocation5], %s393
        // Predicated region
        $region37: #{tpu_custom_call.1} parent=31 // pred_check
          %p395 = pneg %p106
        $region38: #{tpu_custom_call.1} parent=31 // pred_check_branch
          %397 = sbr.rel (%p395) target = $region40
        $region39: #{tpu_custom_call.1} parent=31 // pred_region
          %s399 = ssub.s32 128, 128
          %400 = vsyncadd %s391, %s399
          %s401 = smul.addr %s20, 2
          %s402 = smul.addr %s401, 64
          %s403 = scalar_lea.hbm %s3, %s402
          %s405 = sshll.u32 %s394, 4
          %s406 = int_to_ptr.vmem [resolvable:$true] %s405
          %408 = dma.vmem_to_hbm [thread:$0]  %s406, 128, %s403, %s391
        $region40: #{tpu_custom_call.1} parent=31 // pred_fallthru
          _
      $region32: #{tpu_custom_call.1} parent=5 // pred_fallthru
        _
      %p409 = scmp.le.s32.totalorder 2, %s15
      // Predicated region
      $region41: #{tpu_custom_call.1} parent=5 // pred_check
        %p410 = pneg %p409
      $region42: #{tpu_custom_call.1} parent=5 // pred_check_branch
        %412 = sbr.rel (%p410) target = $region44
      $region43: #{tpu_custom_call.1} parent=5 // pred_region
        %s413 = ssub.s32 %s15, 2
        // Predicated region
        $region45: #{tpu_custom_call.1} parent=43 // pred_check
          %p414 = pneg %p112
        $region46: #{tpu_custom_call.1} parent=43 // pred_check_branch
          %416 = sbr.rel (%p414) target = $region48
        $region47: #{tpu_custom_call.1} parent=43 // pred_region
          %s417 = sand.u32 %s97, 1
          %s418 = scalar_lea.sflag [#allocation4], %s417
          %s419 = sand.u32 %s97, 1
          %s420 = smul.addr %s419, 8
          %s421 = scalar_lea.vmem [#allocation5], %s420
          %422 = dma.done %s418, 128
        $region48: #{tpu_custom_call.1} parent=43 // pred_fallthru
          _
      $region44: #{tpu_custom_call.1} parent=5 // pred_fallthru
        _
    $region6: #{tpu_custom_call.1} parent=1 // loop_footer
      %s19 = sadd.s32 1, %s15
    $region7: #{tpu_custom_call.1} parent=1 // loop_footer_branch
      %14 = sbr.rel target = $region3
    $region8: #{tpu_custom_call.1} parent=1 // loop_exit
      _
    %423 = vsyncpa [#allocation3], 1
    %s424 = scalar_lea.sflag [#allocation3], 1
    %425 = vsyncpa %s424, 1
    %426 = vsyncpa [#allocation4], 1
    %s427 = scalar_lea.sflag [#allocation4], 1
    %428 = vsyncpa %s427, 1

</llo_original>
